<compile_context>
chip_gen: v5e
topology: v5e:2x2
jax: 0.10.0
libtpu: 0.0.40
codegen_flags: <defaults>
</compile_context>

<pallas_src>
import functools

import jax
import jax.numpy as jnp
from jax import lax
from jax.experimental import pallas as pl
from jax.experimental.pallas import tpu as pltpu

NEG_SLOPE = 0.01   # PyTorch nn.LeakyReLU default
HID = 32           # hidden width of every Linear in the module


def _leaky(v):
    # max(v, slope*v) == LeakyReLU(v) for 0 < slope < 1 (cheaper than cmp+where).
    return jnp.maximum(v, NEG_SLOPE * v)


def _out_width(n_actions):
    # Lane-dense output width: q (2n lanes) + state value (1 lane), padded to 128.
    return ((2 * n_actions + 1 + 127) // 128) * 128


def _pick_batch_tile(B):
    # Single step for small/demo batches; otherwise a multiple of 8 (>=256 fills the
    # 256-row MXU on v6e/v7x).  TB <= 512 keeps the double-buffered per-step VMEM
    # footprint well under the v7x 32 MiB scoped limit, so no vmem_limit_bytes needed.
    if B <= 512:
        return B
    for t in (512, 256, 128, 64, 32, 16, 8):
        if B % t == 0:
            return t
    return B   # fall back to a single whole-batch step


def dqn_fused_kernel(x_ref, w0_ref, w1_ref, w2_ref, out_ref):
    """Fused DQN trunk: 3 stacked MXU dots, biases folded, lane-dense output.

    x_ref  : (TB, D+1)        input rows with a trailing ones lane (layer-0 bias).
    w0_ref : (D+1, 33)        [latentrep | carry]             (bias row folded in).
    w1_ref : (33, n*32+2)     [actionrep_0..n-1 | carry | sv] (bias rows folded in).
    w2_ref : (n*32+2, OUT_W)  block-diag advantages | sv passthrough | zero pad.
    out_ref: (TB, OUT_W)      lanes 0..2n-1 = q_nat, lane 2n = state value, rest 0.
    """
    f32 = jnp.float32
    cd = w0_ref.dtype   # MXU operand dtype (f32 demo / v5e; bf16 on v6e/v7x at scale)

    # layer 1: shared latent rep (+ carry-1 lane feeding the downstream biases)
    h = _leaky(jnp.dot(x_ref[...].astype(cd), w0_ref[...],
                       preferred_element_type=f32))                    # (TB, 33)

    # layer 2 (stacked): all action heads + carry + state value, ONE matmul.
    # Leaky everywhere except the sv lane (last lane), which must reach the last
    # matmul pre-activation so the final leaky hits it exactly once.
    z_raw = jnp.dot(h.astype(cd), w1_ref[...],
                    preferred_element_type=f32)                        # (TB, n*32+2)
    lane = lax.broadcasted_iota(jnp.int32, z_raw.shape, 1)
    z = jnp.where(lane == z_raw.shape[1] - 1, z_raw, _leaky(z_raw))

    # (dropout on the action reps is identity in eval mode — see TODO at top)

    # layer 3 (stacked): block-diagonal advantage heads + sv passthrough, ONE matmul,
    # emitted as a dense 128-lane slab (unmasked store).
    out_ref[...] = _leaky(jnp.dot(z.astype(cd), w2_ref[...],
                                  preferred_element_type=f32))         # (TB, OUT_W)


def pack_params(params, n_actions, mxu_dtype=jnp.float32):
    """One-time host-side packing: biases folded, heads stacked, output lane-padded.

    Set mxu_dtype=jnp.bfloat16 on v6e/v7x at replay scale (elementwise stays f32
    in-kernel); keep f32 for exactness / v5e.
    """
    n, D = n_actions, params["wlat"].shape[0]
    f32 = jnp.float32
    zc = n * HID                   # carry lane index in z; sv lane is zc + 1
    out_w = _out_width(n)

    # W0: [x | 1] @ W0 -> [leaky(x@wlat + blat) | 1]
    w0 = jnp.zeros((D + 1, HID + 1), f32)
    w0 = w0.at[:D, :HID].set(params["wlat"])
    w0 = w0.at[D, :HID].set(params["blat"][0])
    w0 = w0.at[D, HID].set(1.0)

    # W1: h_ext @ W1 -> [action_pre_0 .. action_pre_{n-1} | carry | sv_pre]
    w1 = jnp.zeros((HID + 1, zc + 2), f32)
    for i in range(n):
        w1 = w1.at[:HID, i * HID:(i + 1) * HID].set(params["wact"][i])
        w1 = w1.at[HID, i * HID:(i + 1) * HID].set(params["bact"][i, 0])
    w1 = w1.at[HID, zc].set(1.0)                        # carry lane
    w1 = w1.at[:HID, zc + 1].set(params["wsv"][:, 0])   # state-value head
    w1 = w1.at[HID, zc + 1].set(params["bsv"][0, 0])

    # W2: z @ W2 -> [q_pre (2n lanes) | sv_pre passthrough | zero pad to OUT_W]
    w2 = jnp.zeros((zc + 2, out_w), f32)
    for i in range(n):
        w2 = w2.at[i * HID:(i + 1) * HID, 2 * i:2 * i + 2].set(params["wadv"][i])
        w2 = w2.at[zc, 2 * i:2 * i + 2].set(params["badv"][i, 0])
    w2 = w2.at[zc + 1, 2 * n].set(1.0)                  # route sv to lane 2n

    return {"w0": w0.astype(mxu_dtype), "w1": w1.astype(mxu_dtype),
            "w2": w2.astype(mxu_dtype)}


@functools.partial(jax.jit, static_argnames=("n_actions",))
def dqn_forward(x, packed, *, n_actions):
    B, D = x.shape
    f32 = jnp.float32
    zc2 = packed["w1"].shape[1]          # n*HID + 2
    out_w = packed["w2"].shape[1]

    # Layer-0 bias folded as a trailing ones lane (all other biases live in w1/w2),
    # so the kernel takes exactly 4 inputs.
    xe = jnp.concatenate([x.astype(f32), jnp.ones((B, 1), f32)], axis=1)

    TB = _pick_batch_tile(B)
    grid = (B // TB,)

    out = pl.pallas_call(
        dqn_fused_kernel,
        out_shape=jax.ShapeDtypeStruct((B, out_w), f32),
        grid=grid,
        in_specs=[
            pl.BlockSpec((TB, D + 1), lambda i: (i, 0)),
            pl.BlockSpec((D + 1, HID + 1), lambda i: (0, 0)),
            pl.BlockSpec((HID + 1, zc2), lambda i: (0, 0)),
            pl.BlockSpec((zc2, out_w), lambda i: (0, 0)),
        ],
        out_specs=pl.BlockSpec((TB, out_w), lambda i: (i, 0)),
        compiler_params=pltpu.CompilerParams(
            dimension_semantics=("parallel",)),
    )(xe, packed["w0"], packed["w1"], packed["w2"])

    q_nat = out[:, : 2 * n_actions]                         # (B, 2n)
    sv = out[:, 2 * n_actions: 2 * n_actions + 1]           # (B, 1)

    # torch.cat(dim=0).reshape(-1, 2n).reshape(-1, n, 2) element shuffle, per-group
    # mean-centering and state-value add: O(B*n) on the tiny kernel output (replaces
    # the old in-kernel O(B^2) selection-matrix matmuls).
    q_af = jnp.concatenate(
        [q_nat[:, 2 * i: 2 * i + 2] for i in range(n_actions)], axis=0)  # (n*B, 2)
    qp = q_af.reshape(B, n_actions, 2)
    return qp - jnp.mean(qp, axis=1, keepdims=True) + sv[:, None, :]


def make_params(key, input_dim, n_actions):
    """Deterministic PyTorch-Linear-style init: U(-1/sqrt(fan_in), 1/sqrt(fan_in))."""
    ks = jax.random.split(key, 8)

    def u(k, shape, fan_in):
        bound = 1.0 / jnp.sqrt(jnp.float32(fan_in))
        return jax.random.uniform(k, shape, jnp.float32, -bound, bound)

    return {
        "wlat": u(ks[0], (input_dim, HID), input_dim),
        "blat": u(ks[1], (1, HID), input_dim),
        "wsv":  u(ks[2], (HID, 1), HID),
        "bsv":  u(ks[3], (1, 1), HID),
        "wact": u(ks[4], (n_actions, HID, HID), HID),
        "bact": u(ks[5], (n_actions, 1, HID), HID),
        "wadv": u(ks[6], (n_actions, HID, 2), HID),
        "badv": u(ks[7], (n_actions, 1, 2), HID),
    }


def dqn_reference(x, params, n_actions):
    """Pure-JAX reference mirroring the PyTorch forward line-by-line."""
    h = _leaky(x @ params["wlat"] + params["blat"])
    sv = _leaky(h @ params["wsv"] + params["bsv"])
    qs = []
    for i in range(n_actions):
        a = _leaky(h @ params["wact"][i] + params["bact"][i])
        q = _leaky(a @ params["wadv"][i] + params["badv"][i])
        qs.append(q)
    qp = jnp.concatenate(qs, axis=0).reshape(-1, n_actions * 2).reshape(-1, n_actions, 2)
    return qp - jnp.mean(qp, axis=1, keepdims=True) + sv[:, None, :]


if __name__ == "__main__":
    B, input_dim, n_actions = 8, 16, 3

    key = jax.random.PRNGKey(0)
    kx, kp = jax.random.split(key)
    x = jax.random.normal(kx, (B, input_dim), dtype=jnp.float32)
    params = make_params(kp, input_dim, n_actions)
    packed = pack_params(params, n_actions)   # f32 MXU operands (demo / v5e-safe)

    out = jax.block_until_ready(dqn_forward(x, packed, n_actions=n_actions))
    ref = jax.block_until_ready(dqn_reference(x, params, n_actions))

    assert out.shape == (B, n_actions, 2), out.shape
    assert jnp.allclose(out, ref, atol=1e-2, rtol=1e-2), "kernel mismatch vs reference"

    print("KERNEL_OK")
</pallas_src>

<mosaic_0001>
module attributes {stable_mosaic.version = 11 : i64} {
  func.func @dqn_fused_kernel(%arg0: i32, %arg1: memref<8x17xf32, #tpu.memory_space<vmem>>, %arg2: memref<17x33xf32, #tpu.memory_space<vmem>>, %arg3: memref<33x98xf32, #tpu.memory_space<vmem>>, %arg4: memref<98x128xf32, #tpu.memory_space<vmem>>, %arg5: memref<8x128xf32, #tpu.memory_space<vmem>>) attributes {dimension_semantics = [#tpu.dimension_semantics<parallel>], iteration_bounds = array<i64: 1>, scalar_prefetch = 0 : i64, scratch_operands = 0 : i64, tpu.core_type = #tpu.core_type<tc>, window_params = [{transform_indices = @transform_0, window_bounds = array<i64: 8, 17>}, {pipeline_mode = #tpu.pipeline_mode<synchronous>, transform_indices = @transform_1, window_bounds = array<i64: 17, 33>}, {pipeline_mode = #tpu.pipeline_mode<synchronous>, transform_indices = @transform_2, window_bounds = array<i64: 33, 98>}, {pipeline_mode = #tpu.pipeline_mode<synchronous>, transform_indices = @transform_3, window_bounds = array<i64: 98, 128>}, {transform_indices = @transform_4, window_bounds = array<i64: 8, 128>}]} {
    %c0 = arith.constant 0 : index
    %c0_0 = arith.constant 0 : index
    %0 = vector.load %arg1[%c0, %c0_0] : memref<8x17xf32, #tpu.memory_space<vmem>>, vector<8x17xf32>
    %c0_1 = arith.constant 0 : index
    %c0_2 = arith.constant 0 : index
    %1 = vector.load %arg2[%c0_1, %c0_2] : memref<17x33xf32, #tpu.memory_space<vmem>>, vector<17x33xf32>
    %cst = arith.constant dense<0.000000e+00> : vector<8x33xf32>
    %2 = tpu.matmul %0, %1, %cst {dimension_numbers = #tpu.dot_dimension_numbers<[1], [0], [0], [1], [0, 0, 1, 1], [], []>} : vector<8x17xf32>, vector<17x33xf32>, vector<8x33xf32> -> vector<8x33xf32>
    %cst_3 = arith.constant 0.00999999977 : f32
    %3 = vector.broadcast %cst_3 : f32 to vector<8x33xf32>
    %4 = arith.mulf %3, %2 : vector<8x33xf32>
    %5 = arith.maximumf %2, %4 : vector<8x33xf32>
    %c0_4 = arith.constant 0 : index
    %c0_5 = arith.constant 0 : index
    %6 = vector.load %arg3[%c0_4, %c0_5] : memref<33x98xf32, #tpu.memory_space<vmem>>, vector<33x98xf32>
    %cst_6 = arith.constant dense<0.000000e+00> : vector<8x98xf32>
    %7 = tpu.matmul %5, %6, %cst_6 {dimension_numbers = #tpu.dot_dimension_numbers<[1], [0], [0], [1], [0, 0, 1, 1], [], []>} : vector<8x33xf32>, vector<33x98xf32>, vector<8x98xf32> -> vector<8x98xf32>
    %8 = tpu.iota {dimensions = array<i32: 1>} : vector<8x98xi32>
    %c97_i32 = arith.constant 97 : i32
    %9 = vector.broadcast %c97_i32 : i32 to vector<8x98xi32>
    %10 = arith.cmpi eq, %8, %9 : vector<8x98xi32>
    %cst_7 = arith.constant 0.00999999977 : f32
    %11 = vector.broadcast %cst_7 : f32 to vector<8x98xf32>
    %12 = arith.mulf %11, %7 : vector<8x98xf32>
    %13 = arith.maximumf %7, %12 : vector<8x98xf32>
    %14 = arith.select %10, %7, %13 : vector<8x98xi1>, vector<8x98xf32>
    %c0_8 = arith.constant 0 : index
    %c0_9 = arith.constant 0 : index
    %15 = vector.load %arg4[%c0_8, %c0_9] : memref<98x128xf32, #tpu.memory_space<vmem>>, vector<98x128xf32>
    %cst_10 = arith.constant dense<0.000000e+00> : vector<8x128xf32>
    %16 = tpu.matmul %14, %15, %cst_10 {dimension_numbers = #tpu.dot_dimension_numbers<[1], [0], [0], [1], [0, 0, 1, 1], [], []>} : vector<8x98xf32>, vector<98x128xf32>, vector<8x128xf32> -> vector<8x128xf32>
    %cst_11 = arith.constant 0.00999999977 : f32
    %17 = vector.broadcast %cst_11 : f32 to vector<8x128xf32>
    %18 = arith.mulf %17, %16 : vector<8x128xf32>
    %19 = arith.maximumf %16, %18 : vector<8x128xf32>
    %c0_12 = arith.constant 0 : index
    %c0_13 = arith.constant 0 : index
    %20 = vector.load %arg5[%c0_12, %c0_13] : memref<8x128xf32, #tpu.memory_space<vmem>>, vector<8x128xf32>
    tpu.vector_store %arg5[%c0_12, %c0_13], %19 {strides = array<i32>} : memref<8x128xf32, #tpu.memory_space<vmem>>, vector<8x128xf32>,
    return
  }
  func.func @transform_0(%arg0: i32) -> (i32, i32) {
    %c0_i32 = arith.constant 0 : i32
    %c0_i32_0 = arith.constant 0 : i32
    return %arg0, %c0_i32 : i32, i32
  }
  func.func @transform_1(%arg0: i32) -> (i32, i32) {
    %c0_i32 = arith.constant 0 : i32
    %c0_i32_0 = arith.constant 0 : i32
    %c0_i32_1 = arith.constant 0 : i32
    return %c0_i32, %c0_i32_0 : i32, i32
  }
  func.func @transform_2(%arg0: i32) -> (i32, i32) {
    %c0_i32 = arith.constant 0 : i32
    %c0_i32_0 = arith.constant 0 : i32
    %c0_i32_1 = arith.constant 0 : i32
    return %c0_i32, %c0_i32_0 : i32, i32
  }
  func.func @transform_3(%arg0: i32) -> (i32, i32) {
    %c0_i32 = arith.constant 0 : i32
    %c0_i32_0 = arith.constant 0 : i32
    %c0_i32_1 = arith.constant 0 : i32
    return %c0_i32, %c0_i32_0 : i32, i32
  }
  func.func @transform_4(%arg0: i32) -> (i32, i32) {
    %c0_i32 = arith.constant 0 : i32
    %c0_i32_0 = arith.constant 0 : i32
    return %arg0, %c0_i32 : i32, i32
  }
}

</mosaic_0001>

<llo_original>
// kernel: dqn_forward.1
$region0: #{dqn_forward.1}
  #allocation0 [shape = 'u32[]', space=smem, size = 0x4, offset = 0x4, fixed_abs, tag = 'smem constant byte address 0x4 - core index']
  #allocation1 [shape = 'u32[72,128]{1,0:T(1,128)}', space=vmem, size = 0x9000, scoped, tag = 'internal scratch']
  %s0 = inlined_call_operand.vmem [shape: f32[8,17], index: 0, kind: input, shape index: {}]
  %s1 = inlined_call_operand.hbm [shape: f32[17,33], index: 1, kind: input, shape index: {}]
  %s2 = inlined_call_operand.hbm [shape: f32[33,98], index: 2, kind: input, shape index: {}]
  %s3 = inlined_call_operand.hbm [shape: f32[98,128], index: 3, kind: input, shape index: {}]
  %s4 = inlined_call_operand.vmem [shape: f32[8,128], index: 4, kind: output, shape index: {}]
  %s5 = sld [smem:[#allocation0]]
  $region38: #{dqn_forward.1} parent=0
    _
  %s7 = ssub.s32 1, %s5
  %s8 = scalar_select 0, %s7, %s5
  $region1: #{dqn_forward.1} parent=0
    #allocation2 [shape = 'u8[12288]{0}', space=vmem, size = 0x3000, scoped, tag = 'input window, operand 1, single buffered']
    #allocation3 [shape = 's32[1]{0}', space=sflag, size = 0x4, scoped, tag = 'scoped memory for dqn_forward.1']
    #allocation4 [shape = 'u8[20480]{0}', space=vmem, size = 0x5000, scoped, tag = 'input window, operand 2, single buffered']
    #allocation5 [shape = 's32[1]{0}', space=sflag, size = 0x4, scoped, tag = 'scoped memory for dqn_forward.1']
    #allocation6 [shape = 'u8[53248]{0}', space=vmem, size = 0xd000, scoped, tag = 'input window, operand 3, single buffered']
    %9 = vsyncpa [#allocation3], 0
    %10 = vsyncpa [#allocation5], 0
    // Predicated region
    $region2: #{dqn_forward.1} parent=1 // pred_check
      _
    $region3: #{dqn_forward.1} parent=1 // pred_check_branch
      %12 = sbr.rel (0) target = $region5
    $region4: #{dqn_forward.1} parent=1 // pred_region
      _
    $region5: #{dqn_forward.1} parent=1 // pred_fallthru
      _
    // Predicated region
    $region6: #{dqn_forward.1} parent=1 // pred_check
      _
    $region7: #{dqn_forward.1} parent=1 // pred_check_branch
      %14 = sbr.rel (0) target = $region9
    $region8: #{dqn_forward.1} parent=1 // pred_region
      %16 = vsyncadd [#allocation3], 0
      %s17 = sshll.u32 %s1, 4
      %s18 = int_to_ptr.hbm [resolvable:$true] %s17
      %s19 = sshll.u32 [#allocation2], 4
      %s20 = int_to_ptr.vmem [resolvable:$true] %s19
      %25 = dma.hbm_to_vmem [thread:$0]  %s18, 384, %s20, [#allocation3], 128, 128, 8
    $region9: #{dqn_forward.1} parent=1 // pred_fallthru
      _
    // Predicated region
    $region10: #{dqn_forward.1} parent=1 // pred_check
      _
    $region11: #{dqn_forward.1} parent=1 // pred_check_branch
      %27 = sbr.rel (0) target = $region13
    $region12: #{dqn_forward.1} parent=1 // pred_region
      %29 = vsyncadd [#allocation5], 0
      %s30 = sshll.u32 %s2, 4
      %s31 = int_to_ptr.hbm [resolvable:$true] %s30
      %s32 = sshll.u32 [#allocation4], 4
      %s33 = int_to_ptr.vmem [resolvable:$true] %s32
      %38 = dma.hbm_to_vmem [thread:$0]  %s31, 640, %s33, [#allocation5], 128, 128, 8
    $region13: #{dqn_forward.1} parent=1 // pred_fallthru
      _
    // Predicated region
    $region14: #{dqn_forward.1} parent=1 // pred_check
      _
    $region15: #{dqn_forward.1} parent=1 // pred_check_branch
      %40 = sbr.rel (0) target = $region17
    $region16: #{dqn_forward.1} parent=1 // pred_region
      %42 = vsyncadd [#allocation5], 0
      %s43 = sshll.u32 %s3, 4
      %s44 = int_to_ptr.hbm [resolvable:$true] %s43
      %s45 = sshll.u32 [#allocation6], 4
      %s46 = int_to_ptr.vmem [resolvable:$true] %s45
      %51 = dma.hbm_to_vmem [thread:$0]  %s44, 1664, %s46, [#allocation5], 128, 128, 8
    $region17: #{dqn_forward.1} parent=1 // pred_fallthru
      _
    // Predicated region
    $region18: #{dqn_forward.1} parent=1 // pred_check
      _
    $region19: #{dqn_forward.1} parent=1 // pred_check_branch
      %53 = sbr.rel (0) target = $region21
    $region20: #{dqn_forward.1} parent=1 // pred_region
      %55 = dma.done [#allocation3], 384
    $region21: #{dqn_forward.1} parent=1 // pred_fallthru
      _
    // Predicated region
    $region22: #{dqn_forward.1} parent=1 // pred_check
      _
    $region23: #{dqn_forward.1} parent=1 // pred_check_branch
      %57 = sbr.rel (0) target = $region25
    $region24: #{dqn_forward.1} parent=1 // pred_region
      %59 = dma.done [#allocation5], 640
    $region25: #{dqn_forward.1} parent=1 // pred_fallthru
      _
    // Predicated region
    $region26: #{dqn_forward.1} parent=1 // pred_check
      _
    $region27: #{dqn_forward.1} parent=1 // pred_check_branch
      %61 = sbr.rel (0) target = $region29
    $region28: #{dqn_forward.1} parent=1 // pred_region
      %63 = dma.done [#allocation5], 1664
    $region29: #{dqn_forward.1} parent=1 // pred_fallthru
      _
    %v64 = vld [vmem:[%s0] sm:$0xff]
    %v65 = vld [vmem:[#allocation2] sm:$0xff]
    %v66 = vld [vmem:[#allocation2 + $0x8] sm:$0xff]
    %v67 = vld [vmem:[#allocation2 + $0x10] sm:$0x1]
    %vm68 = vcmask 138240
    %v70 = vsel %vm68, %v64, 0
    %vm72 = vcmask 1040384
    %v74 = vsel %vm72, %v67, 0
    %76 = vmatpush.msra.mxu0 0.0
    %77 = vmatpush.msra.mxu0 0.0
    %78 = vmatpush.msra.mxu0 0.0
    %79 = vmatpush.msra.mxu0 0.0
    %80 = vmatpush.msra.mxu0 0.0
    %81 = vmatpush.msra.mxu0 0.0
    %82 = vmatpush.msra.mxu0 0.0
    %83 = vmatpush.msra.mxu0 0.0
    %84 = vmatpush.msra.mxu0 0.0
    %85 = vmatpush.msra.mxu0 0.0
    %86 = vmatpush.msra.mxu0 0.0
    %87 = vmatpush.msra.mxu0 0.0
    %88 = vmatpush.msra.mxu0 0.0
    %89 = vmatpush.msra.mxu0 %v74
    %90 = vmatpush.msra.mxu0 %v66
    %91 = vmatpush.msra.mxu0 %v65
    %92 = vmatmul.f32.gmra.mxu0 %v70
    %v93 = vpop.f32.mrf.mxu0
    %v94 = vadd.f32 0.0, %v93
    %95 = vdwg.mxu0
    %v96 = vmul.f32 %v94, 0.01
    %v97 = vmax.f32 %v94, %v96
    %v98 = vld [vmem:[#allocation4] sm:$0xff]
    %v99 = vld [vmem:[#allocation4 + $0x8] sm:$0xff]
    %v100 = vld [vmem:[#allocation4 + $0x10] sm:$0xff]
    %v101 = vld [vmem:[#allocation4 + $0x18] sm:$0xff]
    %v102 = vld [vmem:[#allocation4 + $0x20] sm:$0x1]
    %vm103 = vcmask 269312
    %v105 = vsel %vm103, %v97, 0
    %v108 = vsel %vm72, %v102, 0
    %110 = vmatpush.msra.mxu0 0.0
    %111 = vmatpush.msra.mxu0 0.0
    %112 = vmatpush.msra.mxu0 0.0
    %113 = vmatpush.msra.mxu0 0.0
    %114 = vmatpush.msra.mxu0 0.0
    %115 = vmatpush.msra.mxu0 0.0
    %116 = vmatpush.msra.mxu0 0.0
    %117 = vmatpush.msra.mxu0 0.0
    %118 = vmatpush.msra.mxu0 0.0
    %119 = vmatpush.msra.mxu0 0.0
    %120 = vmatpush.msra.mxu0 0.0
    %121 = vmatpush.msra.mxu0 %v108
    %122 = vmatpush.msra.mxu0 %v101
    %123 = vmatpush.msra.mxu0 %v100
    %124 = vmatpush.msra.mxu0 %v99
    %125 = vmatpush.msra.mxu0 %v98
    %126 = vmatmul.f32.gmra.mxu0 %v105
    %v127 = vpop.f32.mrf.mxu0
    %v128 = vadd.f32 0.0, %v127
    %129 = vdwg.mxu0
    %v130 = vlaneseq
    %v131 = vand.u32 %v130, 127
    %vm132 = vcmp.eq.s32.totalorder %v131, 97
    %v133 = vmul.f32 %v128, 0.01
    %v134 = vmax.f32 %v128, %v133
    %v135 = vsel %vm132, %v128, %v134
    %v136 = vld [vmem:[#allocation6] sm:$0xff]
    %v137 = vld [vmem:[#allocation6 + $0x8] sm:$0xff]
    %v138 = vld [vmem:[#allocation6 + $0x10] sm:$0xff]
    %v139 = vld [vmem:[#allocation6 + $0x18] sm:$0xff]
    %v140 = vld [vmem:[#allocation6 + $0x20] sm:$0xff]
    %v141 = vld [vmem:[#allocation6 + $0x28] sm:$0xff]
    %v142 = vld [vmem:[#allocation6 + $0x30] sm:$0xff]
    %v143 = vld [vmem:[#allocation6 + $0x38] sm:$0xff]
    %v144 = vld [vmem:[#allocation6 + $0x40] sm:$0xff]
    %v145 = vld [vmem:[#allocation6 + $0x48] sm:$0xff]
    %v146 = vld [vmem:[#allocation6 + $0x50] sm:$0xff]
    %v147 = vld [vmem:[#allocation6 + $0x58] sm:$0xff]
    %v148 = vld [vmem:[#allocation6 + $0x60] sm:$0x3]
    %vm149 = vcmask 801792
    %v151 = vsel %vm149, %v135, 0
    %vm153 = vcmask 1041408
    %v155 = vsel %vm153, %v148, 0
    %157 = vmatpush.msra.mxu0 0.0
    %158 = vmatpush.msra.mxu0 0.0
    %159 = vmatpush.msra.mxu0 0.0
    %160 = vmatpush.msra.mxu0 %v155
    %161 = vmatpush.msra.mxu0 %v147
    %162 = vmatpush.msra.mxu0 %v146
    %163 = vmatpush.msra.mxu0 %v145
    %164 = vmatpush.msra.mxu0 %v144
    %165 = vmatpush.msra.mxu0 %v143
    %166 = vmatpush.msra.mxu0 %v142
    %167 = vmatpush.msra.mxu0 %v141
    %168 = vmatpush.msra.mxu0 %v140
    %169 = vmatpush.msra.mxu0 %v139
    %170 = vmatpush.msra.mxu0 %v138
    %171 = vmatpush.msra.mxu0 %v137
    %172 = vmatpush.msra.mxu0 %v136
    %173 = vmatmul.f32.gmra.mxu0 %v151
    %v174 = vpop.f32.mrf.mxu0
    %v175 = vadd.f32 0.0, %v174
    %176 = vdwg.mxu0
    %v177 = vmul.f32 %v175, 0.01
    %v178 = vmax.f32 %v175, %v177
    %179 = vst [vmem:[%s4] sm:$0xff] %v178
    // Predicated region
    $region30: #{dqn_forward.1} parent=1 // pred_check
      _
    $region31: #{dqn_forward.1} parent=1 // pred_check_branch
      %181 = sbr.rel (0) target = $region33
    $region32: #{dqn_forward.1} parent=1 // pred_region
      _
    $region33: #{dqn_forward.1} parent=1 // pred_fallthru
      _
    // Predicated region
    $region34: #{dqn_forward.1} parent=1 // pred_check
      _
    $region35: #{dqn_forward.1} parent=1 // pred_check_branch
      %183 = sbr.rel (0) target = $region37
    $region36: #{dqn_forward.1} parent=1 // pred_region
      _
    $region37: #{dqn_forward.1} parent=1 // pred_fallthru
      _
    %184 = vsyncpa [#allocation3], 1
    %185 = vsyncpa [#allocation5], 1

</llo_original>
